<compile_context>
chip_gen: v7x
topology: tpu7x:2x2x1
jax: 0.10.0
libtpu: 0.0.40
codegen_flags: <defaults>
</compile_context>

<pallas_src>
import functools

import jax
import jax.numpy as jnp
from jax import lax
from jax.experimental import pallas as pl
from jax.experimental.pallas import tpu as pltpu


# ---------------------------------------------------------------------------
# Kernel
# ---------------------------------------------------------------------------
def _fian_loss_kernel(iou_ref, ious_ref, box_ref, gt_ref, out_ref,
                      acc_bce, acc_reg, acc_cnt, *,
                      tau, cols, tile_p, n_tiles, tiles_per_core, n_tile_slots,
                      box_packed, pair_low_first):
    c = pl.program_id(0)                 # core-split axis ("parallel")
    p = pl.program_id(1)                 # reduction axis  ("arbitrary")
    t = c * tiles_per_core + p           # global tile index along folded cols

    @pl.when(p == 0)
    def _init():
        acc_bce[...] = jnp.zeros_like(acc_bce)
        acc_reg[...] = jnp.zeros_like(acc_reg)
        acc_cnt[...] = jnp.zeros_like(acc_cnt)

    rows = acc_bce.shape[0]

    def tile_body(valid):
        pred = iou_ref[...].astype(jnp.float32)      # [R, Pt]
        targ = ious_ref[...].astype(jnp.float32)     # [R, Pt]

        # BCELoss (reduction='mean' handled in the wrapper), log clamp at -100
        # matches PyTorch.  Folded: -(t*log p + (1-t)*log(1-p)).
        log_p = jnp.maximum(jnp.log(pred), -100.0)
        log_1mp = jnp.maximum(jnp.log(1.0 - pred), -100.0)
        bce = -(targ * (log_p - log_1mp) + log_1mp)

        sel = targ >= jnp.float32(tau)               # proposals used for reg

        if box_packed:
            # (start,end) bf16 pair packed in one u32 lane element; unpack with
            # pure VPU bit ops (bf16 -> f32 == place bits in the top half).
            packed = box_ref[...]                    # [R, Pt] uint32
            lo = pltpu.bitcast(packed << 16, jnp.float32)
            hi = pltpu.bitcast(packed & jnp.uint32(0xFFFF0000), jnp.float32)
            box_s, box_e = (lo, hi) if pair_low_first else (hi, lo)
        else:
            box_s = box_ref[0].astype(jnp.float32)   # [R, Pt]
            box_e = box_ref[1].astype(jnp.float32)

        gt_s = gt_ref[:, 0:1]                        # [R, 1] f32, lane-bcast
        gt_e = gt_ref[:, 1:2]

        def sl1(d):                                  # SmoothL1, beta = 1
            ad = jnp.abs(d)
            return jnp.where(ad < 1.0, 0.5 * d * d, ad - 0.5)

        reg = sl1(box_s - gt_s) + sl1(box_e - gt_e)

        # Elementwise accumulate into VMEM vector partials (no per-step
        # cross-lane reductions, no SMEM scalar RMW chain).
        if valid is None:                            # full tile: no bounds mask
            acc_bce[...] += bce
            acc_reg[...] += jnp.where(sel, reg, 0.0)
            acc_cnt[...] += sel.astype(jnp.float32)
        else:                                        # partial tile
            selv = jnp.logical_and(sel, valid)
            acc_bce[...] += jnp.where(valid, bce, 0.0)
            acc_reg[...] += jnp.where(selv, reg, 0.0)
            acc_cnt[...] += selv.astype(jnp.float32)

    has_partial = (cols % tile_p) != 0
    last = n_tiles - 1

    if has_partial:
        full_cond = t < last
    elif n_tile_slots > n_tiles:         # core split may leave empty tile slots
        full_cond = t <= last
    else:
        full_cond = None                 # statically: every slot is a full tile

    if full_cond is None:
        tile_body(None)
    else:
        @pl.when(full_cond)
        def _full():
            tile_body(None)

    if has_partial:
        @pl.when(t == last)
        def _partial():
            lane = lax.broadcasted_iota(jnp.int32, (rows, tile_p), 1)
            tile_body((t * tile_p + lane) < cols)

    @pl.when(p == pl.num_programs(1) - 1)
    def _finalize():                     # three cross-lane reductions, once
        out_ref[0, 0] = jnp.sum(acc_bce[...])
        out_ref[0, 1] = jnp.sum(acc_reg[...])
        out_ref[0, 2] = jnp.sum(acc_cnt[...])


# ---------------------------------------------------------------------------
# Wrapper helpers
# ---------------------------------------------------------------------------
@functools.lru_cache(maxsize=None)
def _bf16_pair_low_first() -> bool:
    """Bit order of lax.bitcast_convert_type(bf16[..., 2] -> uint32)."""
    try:
        word = int(jax.lax.bitcast_convert_type(
            jnp.array([1.0, -2.0], dtype=jnp.bfloat16), jnp.uint32))
        return (word & 0xFFFF) == 0x3F80            # bf16(1.0) in the low half?
    except Exception:
        return True       # XLA packs element 0 into the least-significant bits


def _vmem_capacity_bytes() -> int:
    try:
        cap = int(getattr(pltpu.get_tpu_info(), "vmem_capacity_bytes", 0))
        if cap > 0:
            return cap
    except Exception:
        pass
    return 64 << 20       # conservative fallback (v7x per-TC VMEM)


def _fold_factor(B: int, P: int, want16: bool) -> int:
    """Sublane fold S: view [B, P] as [B*S, P/S] to fill vreg sublanes."""
    if B >= 8:
        return 1
    for tgt in ((16, 8) if want16 else (8, 16)):
        if tgt % B == 0:
            s = tgt // B
            if s > 1 and P % s == 0 and P // s >= 128:
                return s
    for s in range(min(P, 8 // B), 1, -1):          # any divisor that helps
        if P % s == 0 and P // s >= 128:
            return s
    return 1


def _pick_tile(cols: int, bytes_per_col: int, budget_bytes: int) -> int:
    pt = (budget_bytes // max(bytes_per_col, 1)) // 128 * 128
    pt = max(128, min(pt, 8192))
    return cols if pt >= cols else pt


# ---------------------------------------------------------------------------
# Public entry point
# ---------------------------------------------------------------------------
def fian_loss(iou_predict, box_predict, ious1d, gt, *, tau, alpha,
              tile_p=None, num_cores=1):
    """FIANLoss forward.

    iou_predict [B,P], box_predict [B,P,2], ious1d [B,P], gt [B,2].
    Inputs may be bf16 (recommended: halves HBM bytes, and bf16 boxes stream
    without any transpose); all math is f32 in-kernel.
    Set num_cores=2 on v7x to split the proposal tiles over both TensorCores.
    """
    B, P = iou_predict.shape
    assert box_predict.shape == (B, P, 2)
    assert ious1d.shape == (B, P) and gt.shape == (B, 2)

    box_packed = box_predict.dtype == jnp.bfloat16
    want16 = (jnp.dtype(iou_predict.dtype).itemsize == 2
              and jnp.dtype(ious1d.dtype).itemsize == 2)

    # ---- sublane fold (zero-copy reshapes) --------------------------------
    S = _fold_factor(B, P, want16)
    R, Pc = B * S, P // S
    iou_f = iou_predict.reshape(R, Pc)
    ious_f = ious1d.reshape(R, Pc)
    gt_f = gt.astype(jnp.float32)
    if S > 1:
        gt_f = jnp.repeat(gt_f, S, axis=0)          # [R, 2], tiny

    if box_packed:
        # zero-copy: bf16 (start,end) pair -> one u32 lane element.
        box_in = lax.bitcast_convert_type(box_predict, jnp.uint32).reshape(R, Pc)
    else:
        # TODO(synk): for f32 boxes, have the producer emit [2, B, P] (or two
        # [B, P] planes) so this single extra pass over box goes away.
        box_in = jnp.transpose(box_predict, (2, 0, 1)).reshape(2, R, Pc)

    # ---- tiling along the (folded) proposal axis --------------------------
    bytes_per_col = (
        2 * R * (jnp.dtype(iou_predict.dtype).itemsize
                 + jnp.dtype(ious1d.dtype).itemsize)            # dbl-buffered
        + 2 * R * (4 if box_packed else 2 * jnp.dtype(box_predict.dtype).itemsize)
        + 3 * 4 * R)                                            # f32 partials

    if tile_p is None:
        Pt = _pick_tile(Pc, bytes_per_col, budget_bytes=8 << 20)
    else:
        Pt = max(1, int(tile_p))
        if Pt < Pc:
            Pt = ((Pt + 127) // 128) * 128          # (8,128) BlockSpec rule
        if Pt >= Pc:
            Pt = Pc

    footprint = bytes_per_col * Pt + (2 << 20)
    vmem_limit = None
    if footprint > (12 << 20):
        # TODO(synk): for very large batch sizes tile the folded row axis too
        # instead of only raising the scoped-VMEM limit.
        vmem_limit = int(min(max(16 << 20, footprint + footprint // 2),
                             _vmem_capacity_bytes()))

    NC = max(1, int(num_cores))
    NT = (Pc + Pt - 1) // Pt
    NP = (NT + NC - 1) // NC

    def _tile_idx(c, p):
        # Clamp overflow tile slots (core split) to the last real block so the
        # pipeline re-uses the same block (at most one wasted fetch per core).
        return jnp.minimum(c * NP + p, NT - 1)

    in_specs = [
        pl.BlockSpec((R, Pt), lambda c, p: (0, _tile_idx(c, p))),        # iou
        pl.BlockSpec((R, Pt), lambda c, p: (0, _tile_idx(c, p))),        # ious
    ]
    if box_packed:
        in_specs.append(pl.BlockSpec((R, Pt), lambda c, p: (0, _tile_idx(c, p))))
    else:
        in_specs.append(
            pl.BlockSpec((2, R, Pt), lambda c, p: (0, 0, _tile_idx(c, p))))
    in_specs.append(pl.BlockSpec((R, 2), lambda c, p: (0, 0)))           # gt

    kernel = functools.partial(
        _fian_loss_kernel, tau=float(tau), cols=Pc, tile_p=Pt, n_tiles=NT,
        tiles_per_core=NP, n_tile_slots=NC * NP, box_packed=box_packed,
        pair_low_first=_bf16_pair_low_first() if box_packed else True)

    partials = pl.pallas_call(
        kernel,
        out_shape=jax.ShapeDtypeStruct((NC, 3), jnp.float32),
        grid=(NC, NP),
        in_specs=in_specs,
        out_specs=pl.BlockSpec((1, 3), lambda c, p: (c, 0),
                               memory_space=pltpu.MemorySpace.SMEM),
        scratch_shapes=[pltpu.VMEM((R, Pt), jnp.float32) for _ in range(3)],
        compiler_params=pltpu.CompilerParams(
            dimension_semantics=("parallel", "arbitrary"),
            vmem_limit_bytes=vmem_limit),
    )(iou_f, ious_f, box_in, gt_f)

    # ---- tiny scalar epilogue (combine per-core partials) -----------------
    bce_sum = jnp.sum(partials[:, 0])
    reg_sum = jnp.sum(partials[:, 1])
    sel_cnt = jnp.sum(partials[:, 2])

    cls_loss = bce_sum / jnp.float32(float(B) * float(P))
    # 2 coords per selected proposal; NaN if nothing selected, matching
    # torch.mean over an empty tensor.
    reg_loss = reg_sum / (2.0 * sel_cnt)
    total = cls_loss + jnp.float32(alpha) * reg_loss
    return {'total_loss': total, 'alignment_loss': cls_loss,
            'regression_loss': reg_loss}


# ---------------------------------------------------------------------------
# Pure-JAX reference mirroring the PyTorch module
# ---------------------------------------------------------------------------
def _reference(iou_predict, box_predict, ious1d, gt, *, tau, alpha):
    iou = iou_predict.astype(jnp.float32)
    t = ious1d.astype(jnp.float32)
    bx = box_predict.astype(jnp.float32)
    g = gt.astype(jnp.float32)
    log_p = jnp.maximum(jnp.log(iou), -100.0)
    log_1mp = jnp.maximum(jnp.log(1.0 - iou), -100.0)
    cls_loss = jnp.mean(-(t * log_p + (1.0 - t) * log_1mp))
    mask = (t >= tau).astype(jnp.float32)[:, :, None]
    d = bx - g[:, None, :]
    sl1 = jnp.where(jnp.abs(d) < 1.0, 0.5 * d * d, jnp.abs(d) - 0.5)
    reg_loss = jnp.sum(sl1 * mask) / (2.0 * jnp.sum(mask))
    return cls_loss + alpha * reg_loss, cls_loss, reg_loss


if __name__ == "__main__":
    key = jax.random.PRNGKey(0)
    k1, k2, k3, k4 = jax.random.split(key, 4)

    B, P = 4, 384                # folds to [8, 192]; 192 = 128 + partial 64
    tau, alpha = 0.5, 0.25

    iou_predict = jax.nn.sigmoid(jax.random.normal(k1, (B, P), jnp.float32))
    ious1d = jax.nn.sigmoid(jax.random.normal(k2, (B, P), jnp.float32))
    box_predict = jax.random.normal(k3, (B, P, 2), jnp.float32)
    gt = jax.random.normal(k4, (B, 2), jnp.float32)

    rt, rc, rr = _reference(iou_predict, box_predict, ious1d, gt,
                            tau=tau, alpha=alpha)

    # 1) f32, forced small tile -> sublane fold + multi-tile grid + partial tile.
    out = fian_loss(iou_predict, box_predict, ious1d, gt,
                    tau=tau, alpha=alpha, tile_p=128)
    jax.block_until_ready(out['total_loss'])
    assert jnp.allclose(out['alignment_loss'], rc, atol=2e-5, rtol=1e-5)
    assert jnp.allclose(out['regression_loss'], rr, atol=2e-5, rtol=1e-5)
    assert jnp.allclose(out['total_loss'], rt, atol=2e-5, rtol=1e-5)

    # 2) two-core split (v7x); sequential (and still correct) on 1-TC chips.
    out2 = fian_loss(iou_predict, box_predict, ious1d, gt,
                     tau=tau, alpha=alpha, tile_p=128, num_cores=2)
    jax.block_until_ready(out2['total_loss'])
    assert jnp.allclose(out2['total_loss'], rt, atol=2e-5, rtol=1e-5)

    # 3) bf16 transport: packed-pair box path (no transpose), f32 math inside.
    iou_bf = iou_predict.astype(jnp.bfloat16)
    ious_bf = ious1d.astype(jnp.bfloat16)
    box_bf = box_predict.astype(jnp.bfloat16)
    rt3, rc3, rr3 = _reference(iou_bf, box_bf, ious_bf, gt, tau=tau, alpha=alpha)
    out3 = fian_loss(iou_bf, box_bf, ious_bf, gt, tau=tau, alpha=alpha,
                     tile_p=128)
    jax.block_until_ready(out3['total_loss'])
    assert jnp.allclose(out3['alignment_loss'], rc3, atol=2e-3, rtol=2e-3)
    assert jnp.allclose(out3['regression_loss'], rr3, atol=2e-3, rtol=2e-3)
    assert jnp.allclose(out3['total_loss'], rt3, atol=2e-3, rtol=2e-3)

    # 4) odd P -> sublane fold disabled, unfolded masked path.
    P2 = 257
    iou2 = jax.nn.sigmoid(jax.random.normal(k1, (B, P2), jnp.float32))
    ious2 = jax.nn.sigmoid(jax.random.normal(k2, (B, P2), jnp.float32))
    box2 = jax.random.normal(k3, (B, P2, 2), jnp.float32)
    rt4, _, _ = _reference(iou2, box2, ious2, gt, tau=tau, alpha=alpha)
    out4 = fian_loss(iou2, box2, ious2, gt, tau=tau, alpha=alpha, tile_p=128)
    jax.block_until_ready(out4['total_loss'])
    assert jnp.allclose(out4['total_loss'], rt4, atol=2e-5, rtol=1e-5)

    print("KERNEL_OK")
</pallas_src>

<mosaic_0001>
module attributes {stable_mosaic.version = 11 : i64} {
  func.func @_fian_loss_kernel(%arg0: i32, %arg1: i32, %arg2: memref<8x128xf32, #tpu.memory_space<vmem>>, %arg3: memref<8x128xf32, #tpu.memory_space<vmem>>, %arg4: memref<2x8x128xf32, #tpu.memory_space<vmem>>, %arg5: memref<8x2xf32, #tpu.memory_space<vmem>>, %arg6: memref<1x3xf32, #tpu.memory_space<smem>>, %arg7: memref<8x128xf32, #tpu.memory_space<vmem>>, %arg8: memref<8x128xf32, #tpu.memory_space<vmem>>, %arg9: memref<8x128xf32, #tpu.memory_space<vmem>>) attributes {dimension_semantics = [#tpu.dimension_semantics<parallel>, #tpu.dimension_semantics<arbitrary>], iteration_bounds = array<i64: 1, 2>, scalar_prefetch = 0 : i64, scratch_operands = 3 : i64, tpu.core_type = #tpu.core_type<tc>, window_params = [{transform_indices = @transform_0, window_bounds = array<i64: 8, 128>}, {transform_indices = @transform_1, window_bounds = array<i64: 8, 128>}, {transform_indices = @transform_2, window_bounds = array<i64: 2, 8, 128>}, {pipeline_mode = #tpu.pipeline_mode<synchronous>, transform_indices = @transform_3, window_bounds = array<i64: 8, 2>}, {transform_indices = @transform_4, window_bounds = array<i64: 1, 3>}]} {
    %c2_i32 = arith.constant 2 : i32
    %0 = arith.muli %arg0, %c2_i32 : i32
    %1 = arith.addi %0, %arg1 : i32
    %c0_i32 = arith.constant 0 : i32
    %2 = arith.cmpi eq, %arg1, %c0_i32 : i32
    %3 = arith.extui %2 : i1 to i32
    %c0_i32_0 = arith.constant 0 : i32
    %4 = arith.cmpi ne, %3, %c0_i32_0 : i32
    scf.if %4 {
      %cst = arith.constant 0.000000e+00 : f32
      %14 = vector.broadcast %cst : f32 to vector<8x128xf32>
      %c0 = arith.constant 0 : index
      %c0_6 = arith.constant 0 : index
      %15 = vector.load %arg7[%c0, %c0_6] : memref<8x128xf32, #tpu.memory_space<vmem>>, vector<8x128xf32>
      tpu.vector_store %arg7[%c0, %c0_6], %14 {strides = array<i32>} : memref<8x128xf32, #tpu.memory_space<vmem>>, vector<8x128xf32>,
      %cst_7 = arith.constant 0.000000e+00 : f32
      %16 = vector.broadcast %cst_7 : f32 to vector<8x128xf32>
      %c0_8 = arith.constant 0 : index
      %c0_9 = arith.constant 0 : index
      %17 = vector.load %arg8[%c0_8, %c0_9] : memref<8x128xf32, #tpu.memory_space<vmem>>, vector<8x128xf32>
      tpu.vector_store %arg8[%c0_8, %c0_9], %16 {strides = array<i32>} : memref<8x128xf32, #tpu.memory_space<vmem>>, vector<8x128xf32>,
      %cst_10 = arith.constant 0.000000e+00 : f32
      %18 = vector.broadcast %cst_10 : f32 to vector<8x128xf32>
      %c0_11 = arith.constant 0 : index
      %c0_12 = arith.constant 0 : index
      %19 = vector.load %arg9[%c0_11, %c0_12] : memref<8x128xf32, #tpu.memory_space<vmem>>, vector<8x128xf32>
      tpu.vector_store %arg9[%c0_11, %c0_12], %18 {strides = array<i32>} : memref<8x128xf32, #tpu.memory_space<vmem>>, vector<8x128xf32>,
    } else {
    }
    %c1_i32 = arith.constant 1 : i32
    %5 = arith.cmpi slt, %1, %c1_i32 : i32
    %6 = arith.extui %5 : i1 to i32
    %c0_i32_1 = arith.constant 0 : i32
    %7 = arith.cmpi ne, %6, %c0_i32_1 : i32
    scf.if %7 {
      %c0 = arith.constant 0 : index
      %c0_6 = arith.constant 0 : index
      %14 = vector.load %arg2[%c0, %c0_6] : memref<8x128xf32, #tpu.memory_space<vmem>>, vector<8x128xf32>
      %c0_7 = arith.constant 0 : index
      %c0_8 = arith.constant 0 : index
      %15 = vector.load %arg3[%c0_7, %c0_8] : memref<8x128xf32, #tpu.memory_space<vmem>>, vector<8x128xf32>
      %16 = math.log %14 : vector<8x128xf32>
      %cst = arith.constant -1.000000e+02 : f32
      %17 = vector.broadcast %cst : f32 to vector<8x128xf32>
      %18 = arith.maximumf %16, %17 : vector<8x128xf32>
      %cst_9 = arith.constant 1.000000e+00 : f32
      %19 = vector.broadcast %cst_9 : f32 to vector<8x128xf32>
      %20 = arith.subf %19, %14 : vector<8x128xf32>
      %21 = math.log %20 : vector<8x128xf32>
      %cst_10 = arith.constant -1.000000e+02 : f32
      %22 = vector.broadcast %cst_10 : f32 to vector<8x128xf32>
      %23 = arith.maximumf %21, %22 : vector<8x128xf32>
      %24 = arith.subf %18, %23 : vector<8x128xf32>
      %25 = arith.mulf %15, %24 : vector<8x128xf32>
      %26 = arith.addf %25, %23 : vector<8x128xf32>
      %cst_11 = arith.constant 0.000000e+00 : f32
      %27 = vector.broadcast %cst_11 : f32 to vector<8x128xf32>
      %28 = arith.subf %27, %26 : vector<8x128xf32>
      %cst_12 = arith.constant 5.000000e-01 : f32
      %29 = vector.broadcast %cst_12 : f32 to vector<8x128xf32>
      %30 = arith.cmpf oge, %15, %29 : vector<8x128xf32>
      %c0_13 = arith.constant 0 : index
      %c0_14 = arith.constant 0 : index
      %c0_15 = arith.constant 0 : index
      %31 = vector.load %arg4[%c0_13, %c0_14, %c0_15] : memref<2x8x128xf32, #tpu.memory_space<vmem>>, vector<1x8x128xf32>
      %32 = vector.shape_cast %31 : vector<1x8x128xf32> to vector<8x128xf32>
      %c1 = arith.constant 1 : index
      %c0_16 = arith.constant 0 : index
      %c0_17 = arith.constant 0 : index
      %33 = vector.load %arg4[%c1, %c0_16, %c0_17] : memref<2x8x128xf32, #tpu.memory_space<vmem>>, vector<1x8x128xf32>
      %34 = vector.shape_cast %33 : vector<1x8x128xf32> to vector<8x128xf32>
      %c0_18 = arith.constant 0 : index
      %c0_19 = arith.constant 0 : index
      %35 = vector.load %arg5[%c0_18, %c0_19] : memref<8x2xf32, #tpu.memory_space<vmem>>, vector<8x1xf32>
      %c0_20 = arith.constant 0 : index
      %c1_21 = arith.constant 1 : index
      %36 = vector.load %arg5[%c0_20, %c1_21] : memref<8x2xf32, #tpu.memory_space<vmem>>, vector<8x1xf32>
      %37 = vector.broadcast %35 : vector<8x1xf32> to vector<8x128xf32>
      %38 = arith.subf %32, %37 : vector<8x128xf32>
      %39 = math.absf %38 : vector<8x128xf32>
      %cst_22 = arith.constant 1.000000e+00 : f32
      %40 = vector.broadcast %cst_22 : f32 to vector<8x128xf32>
      %41 = arith.cmpf olt, %39, %40 : vector<8x128xf32>
      %cst_23 = arith.constant 5.000000e-01 : f32
      %42 = vector.broadcast %cst_23 : f32 to vector<8x128xf32>
      %43 = arith.mulf %42, %38 : vector<8x128xf32>
      %44 = arith.mulf %43, %38 : vector<8x128xf32>
      %cst_24 = arith.constant 5.000000e-01 : f32
      %45 = vector.broadcast %cst_24 : f32 to vector<8x128xf32>
      %46 = arith.subf %39, %45 : vector<8x128xf32>
      %47 = arith.select %41, %44, %46 : vector<8x128xi1>, vector<8x128xf32>
      %48 = vector.broadcast %36 : vector<8x1xf32> to vector<8x128xf32>
      %49 = arith.subf %34, %48 : vector<8x128xf32>
      %50 = math.absf %49 : vector<8x128xf32>
      %cst_25 = arith.constant 1.000000e+00 : f32
      %51 = vector.broadcast %cst_25 : f32 to vector<8x128xf32>
      %52 = arith.cmpf olt, %50, %51 : vector<8x128xf32>
      %cst_26 = arith.constant 5.000000e-01 : f32
      %53 = vector.broadcast %cst_26 : f32 to vector<8x128xf32>
      %54 = arith.mulf %53, %49 : vector<8x128xf32>
      %55 = arith.mulf %54, %49 : vector<8x128xf32>
      %cst_27 = arith.constant 5.000000e-01 : f32
      %56 = vector.broadcast %cst_27 : f32 to vector<8x128xf32>
      %57 = arith.subf %50, %56 : vector<8x128xf32>
      %58 = arith.select %52, %55, %57 : vector<8x128xi1>, vector<8x128xf32>
      %59 = arith.addf %47, %58 : vector<8x128xf32>
      %c0_28 = arith.constant 0 : index
      %c0_29 = arith.constant 0 : index
      %60 = vector.load %arg7[%c0_28, %c0_29] : memref<8x128xf32, #tpu.memory_space<vmem>>, vector<8x128xf32>
      %61 = arith.addf %60, %28 : vector<8x128xf32>
      %c0_30 = arith.constant 0 : index
      %c0_31 = arith.constant 0 : index
      %62 = vector.load %arg7[%c0_30, %c0_31] : memref<8x128xf32, #tpu.memory_space<vmem>>, vector<8x128xf32>
      tpu.vector_store %arg7[%c0_30, %c0_31], %61 {strides = array<i32>} : memref<8x128xf32, #tpu.memory_space<vmem>>, vector<8x128xf32>,
      %c0_32 = arith.constant 0 : index
      %c0_33 = arith.constant 0 : index
      %63 = vector.load %arg8[%c0_32, %c0_33] : memref<8x128xf32, #tpu.memory_space<vmem>>, vector<8x128xf32>
      %cst_34 = arith.constant 0.000000e+00 : f32
      %64 = vector.broadcast %cst_34 : f32 to vector<8x128xf32>
      %65 = arith.select %30, %59, %64 : vector<8x128xi1>, vector<8x128xf32>
      %66 = arith.addf %63, %65 : vector<8x128xf32>
      %c0_35 = arith.constant 0 : index
      %c0_36 = arith.constant 0 : index
      %67 = vector.load %arg8[%c0_35, %c0_36] : memref<8x128xf32, #tpu.memory_space<vmem>>, vector<8x128xf32>
      tpu.vector_store %arg8[%c0_35, %c0_36], %66 {strides = array<i32>} : memref<8x128xf32, #tpu.memory_space<vmem>>, vector<8x128xf32>,
      %c0_37 = arith.constant 0 : index
      %c0_38 = arith.constant 0 : index
      %68 = vector.load %arg9[%c0_37, %c0_38] : memref<8x128xf32, #tpu.memory_space<vmem>>, vector<8x128xf32>
      %69 = arith.extui %30 : vector<8x128xi1> to vector<8x128xi32>
      %70 = arith.sitofp %69 : vector<8x128xi32> to vector<8x128xf32>
      %71 = arith.addf %68, %70 : vector<8x128xf32>
      %c0_39 = arith.constant 0 : index
      %c0_40 = arith.constant 0 : index
      %72 = vector.load %arg9[%c0_39, %c0_40] : memref<8x128xf32, #tpu.memory_space<vmem>>, vector<8x128xf32>
      tpu.vector_store %arg9[%c0_39, %c0_40], %71 {strides = array<i32>} : memref<8x128xf32, #tpu.memory_space<vmem>>, vector<8x128xf32>,
    } else {
    }
    %c1_i32_2 = arith.constant 1 : i32
    %8 = arith.cmpi eq, %1, %c1_i32_2 : i32
    %9 = arith.extui %8 : i1 to i32
    %c0_i32_3 = arith.constant 0 : i32
    %10 = arith.cmpi ne, %9, %c0_i32_3 : i32
    scf.if %10 {
      %14 = tpu.iota {dimensions = array<i32: 1>} : vector<8x128xi32>
      %c128_i32 = arith.constant 128 : i32
      %15 = arith.muli %1, %c128_i32 : i32
      %16 = vector.broadcast %15 : i32 to vector<8x128xi32>
      %17 = arith.addi %16, %14 : vector<8x128xi32>
      %c192_i32 = arith.constant 192 : i32
      %18 = vector.broadcast %c192_i32 : i32 to vector<8x128xi32>
      %19 = arith.cmpi slt, %17, %18 : vector<8x128xi32>
      %c0 = arith.constant 0 : index
      %c0_6 = arith.constant 0 : index
      %20 = vector.load %arg2[%c0, %c0_6] : memref<8x128xf32, #tpu.memory_space<vmem>>, vector<8x128xf32>
      %c0_7 = arith.constant 0 : index
      %c0_8 = arith.constant 0 : index
      %21 = vector.load %arg3[%c0_7, %c0_8] : memref<8x128xf32, #tpu.memory_space<vmem>>, vector<8x128xf32>
      %22 = math.log %20 : vector<8x128xf32>
      %cst = arith.constant -1.000000e+02 : f32
      %23 = vector.broadcast %cst : f32 to vector<8x128xf32>
      %24 = arith.maximumf %22, %23 : vector<8x128xf32>
      %cst_9 = arith.constant 1.000000e+00 : f32
      %25 = vector.broadcast %cst_9 : f32 to vector<8x128xf32>
      %26 = arith.subf %25, %20 : vector<8x128xf32>
      %27 = math.log %26 : vector<8x128xf32>
      %cst_10 = arith.constant -1.000000e+02 : f32
      %28 = vector.broadcast %cst_10 : f32 to vector<8x128xf32>
      %29 = arith.maximumf %27, %28 : vector<8x128xf32>
      %30 = arith.subf %24, %29 : vector<8x128xf32>
      %31 = arith.mulf %21, %30 : vector<8x128xf32>
      %32 = arith.addf %31, %29 : vector<8x128xf32>
      %cst_11 = arith.constant 0.000000e+00 : f32
      %33 = vector.broadcast %cst_11 : f32 to vector<8x128xf32>
      %34 = arith.subf %33, %32 : vector<8x128xf32>
      %cst_12 = arith.constant 5.000000e-01 : f32
      %35 = vector.broadcast %cst_12 : f32 to vector<8x128xf32>
      %36 = arith.cmpf oge, %21, %35 : vector<8x128xf32>
      %c0_13 = arith.constant 0 : index
      %c0_14 = arith.constant 0 : index
      %c0_15 = arith.constant 0 : index
      %37 = vector.load %arg4[%c0_13, %c0_14, %c0_15] : memref<2x8x128xf32, #tpu.memory_space<vmem>>, vector<1x8x128xf32>
      %38 = vector.shape_cast %37 : vector<1x8x128xf32> to vector<8x128xf32>
      %c1 = arith.constant 1 : index
      %c0_16 = arith.constant 0 : index
      %c0_17 = arith.constant 0 : index
      %39 = vector.load %arg4[%c1, %c0_16, %c0_17] : memref<2x8x128xf32, #tpu.memory_space<vmem>>, vector<1x8x128xf32>
      %40 = vector.shape_cast %39 : vector<1x8x128xf32> to vector<8x128xf32>
      %c0_18 = arith.constant 0 : index
      %c0_19 = arith.constant 0 : index
      %41 = vector.load %arg5[%c0_18, %c0_19] : memref<8x2xf32, #tpu.memory_space<vmem>>, vector<8x1xf32>
      %c0_20 = arith.constant 0 : index
      %c1_21 = arith.constant 1 : index
      %42 = vector.load %arg5[%c0_20, %c1_21] : memref<8x2xf32, #tpu.memory_space<vmem>>, vector<8x1xf32>
      %43 = vector.broadcast %41 : vector<8x1xf32> to vector<8x128xf32>
      %44 = arith.subf %38, %43 : vector<8x128xf32>
      %45 = math.absf %44 : vector<8x128xf32>
      %cst_22 = arith.constant 1.000000e+00 : f32
      %46 = vector.broadcast %cst_22 : f32 to vector<8x128xf32>
      %47 = arith.cmpf olt, %45, %46 : vector<8x128xf32>
      %cst_23 = arith.constant 5.000000e-01 : f32
      %48 = vector.broadcast %cst_23 : f32 to vector<8x128xf32>
      %49 = arith.mulf %48, %44 : vector<8x128xf32>
      %50 = arith.mulf %49, %44 : vector<8x128xf32>
      %cst_24 = arith.constant 5.000000e-01 : f32
      %51 = vector.broadcast %cst_24 : f32 to vector<8x128xf32>
      %52 = arith.subf %45, %51 : vector<8x128xf32>
      %53 = arith.select %47, %50, %52 : vector<8x128xi1>, vector<8x128xf32>
      %54 = vector.broadcast %42 : vector<8x1xf32> to vector<8x128xf32>
      %55 = arith.subf %40, %54 : vector<8x128xf32>
      %56 = math.absf %55 : vector<8x128xf32>
      %cst_25 = arith.constant 1.000000e+00 : f32
      %57 = vector.broadcast %cst_25 : f32 to vector<8x128xf32>
      %58 = arith.cmpf olt, %56, %57 : vector<8x128xf32>
      %cst_26 = arith.constant 5.000000e-01 : f32
      %59 = vector.broadcast %cst_26 : f32 to vector<8x128xf32>
      %60 = arith.mulf %59, %55 : vector<8x128xf32>
      %61 = arith.mulf %60, %55 : vector<8x128xf32>
      %cst_27 = arith.constant 5.000000e-01 : f32
      %62 = vector.broadcast %cst_27 : f32 to vector<8x128xf32>
      %63 = arith.subf %56, %62 : vector<8x128xf32>
      %64 = arith.select %58, %61, %63 : vector<8x128xi1>, vector<8x128xf32>
      %65 = arith.addf %53, %64 : vector<8x128xf32>
      %66 = arith.andi %36, %19 : vector<8x128xi1>
      %c0_28 = arith.constant 0 : index
      %c0_29 = arith.constant 0 : index
      %67 = vector.load %arg7[%c0_28, %c0_29] : memref<8x128xf32, #tpu.memory_space<vmem>>, vector<8x128xf32>
      %cst_30 = arith.constant 0.000000e+00 : f32
      %68 = vector.broadcast %cst_30 : f32 to vector<8x128xf32>
      %69 = arith.select %19, %34, %68 : vector<8x128xi1>, vector<8x128xf32>
      %70 = arith.addf %67, %69 : vector<8x128xf32>
      %c0_31 = arith.constant 0 : index
      %c0_32 = arith.constant 0 : index
      %71 = vector.load %arg7[%c0_31, %c0_32] : memref<8x128xf32, #tpu.memory_space<vmem>>, vector<8x128xf32>
      tpu.vector_store %arg7[%c0_31, %c0_32], %70 {strides = array<i32>} : memref<8x128xf32, #tpu.memory_space<vmem>>, vector<8x128xf32>,
      %c0_33 = arith.constant 0 : index
      %c0_34 = arith.constant 0 : index
      %72 = vector.load %arg8[%c0_33, %c0_34] : memref<8x128xf32, #tpu.memory_space<vmem>>, vector<8x128xf32>
      %cst_35 = arith.constant 0.000000e+00 : f32
      %73 = vector.broadcast %cst_35 : f32 to vector<8x128xf32>
      %74 = arith.select %66, %65, %73 : vector<8x128xi1>, vector<8x128xf32>
      %75 = arith.addf %72, %74 : vector<8x128xf32>
      %c0_36 = arith.constant 0 : index
      %c0_37 = arith.constant 0 : index
      %76 = vector.load %arg8[%c0_36, %c0_37] : memref<8x128xf32, #tpu.memory_space<vmem>>, vector<8x128xf32>
      tpu.vector_store %arg8[%c0_36, %c0_37], %75 {strides = array<i32>} : memref<8x128xf32, #tpu.memory_space<vmem>>, vector<8x128xf32>,
      %c0_38 = arith.constant 0 : index
      %c0_39 = arith.constant 0 : index
      %77 = vector.load %arg9[%c0_38, %c0_39] : memref<8x128xf32, #tpu.memory_space<vmem>>, vector<8x128xf32>
      %78 = arith.extui %66 : vector<8x128xi1> to vector<8x128xi32>
      %79 = arith.sitofp %78 : vector<8x128xi32> to vector<8x128xf32>
      %80 = arith.addf %77, %79 : vector<8x128xf32>
      %c0_40 = arith.constant 0 : index
      %c0_41 = arith.constant 0 : index
      %81 = vector.load %arg9[%c0_40, %c0_41] : memref<8x128xf32, #tpu.memory_space<vmem>>, vector<8x128xf32>
      tpu.vector_store %arg9[%c0_40, %c0_41], %80 {strides = array<i32>} : memref<8x128xf32, #tpu.memory_space<vmem>>, vector<8x128xf32>,
    } else {
    }
    %c1_i32_4 = arith.constant 1 : i32
    %11 = arith.cmpi eq, %arg1, %c1_i32_4 : i32
    %12 = arith.extui %11 : i1 to i32
    %c0_i32_5 = arith.constant 0 : i32
    %13 = arith.cmpi ne, %12, %c0_i32_5 : i32
    scf.if %13 {
      %c0 = arith.constant 0 : index
      %c0_6 = arith.constant 0 : index
      %14 = vector.load %arg7[%c0, %c0_6] : memref<8x128xf32, #tpu.memory_space<vmem>>, vector<8x128xf32>
      %15 = vector.shape_cast %14 : vector<8x128xf32> to vector<1x8x128xf32>
      %cst = arith.constant dense<0.000000e+00> : vector<1xf32>
      %16 = vector.multi_reduction <add>, %15, %cst [1, 2] : vector<1x8x128xf32> to vector<1xf32>
      %17 = vector.shape_cast %16 : vector<1xf32> to vector<1x1x1xf32>
      %18 = vector.extract %17[0, 0, 0] : f32 from vector<1x1x1xf32>
      %c0_7 = arith.constant 0 : index
      %c0_8 = arith.constant 0 : index
      %19 = memref.load %arg6[%c0_7, %c0_8] : memref<1x3xf32, #tpu.memory_space<smem>>
      memref.store %18, %arg6[%c0_7, %c0_8] : memref<1x3xf32, #tpu.memory_space<smem>>
      %c0_9 = arith.constant 0 : index
      %c0_10 = arith.constant 0 : index
      %20 = vector.load %arg8[%c0_9, %c0_10] : memref<8x128xf32, #tpu.memory_space<vmem>>, vector<8x128xf32>
      %21 = vector.shape_cast %20 : vector<8x128xf32> to vector<1x8x128xf32>
      %cst_11 = arith.constant dense<0.000000e+00> : vector<1xf32>
      %22 = vector.multi_reduction <add>, %21, %cst_11 [1, 2] : vector<1x8x128xf32> to vector<1xf32>
      %23 = vector.shape_cast %22 : vector<1xf32> to vector<1x1x1xf32>
      %24 = vector.extract %23[0, 0, 0] : f32 from vector<1x1x1xf32>
      %c0_12 = arith.constant 0 : index
      %c1 = arith.constant 1 : index
      %25 = memref.load %arg6[%c0_12, %c1] : memref<1x3xf32, #tpu.memory_space<smem>>
      memref.store %24, %arg6[%c0_12, %c1] : memref<1x3xf32, #tpu.memory_space<smem>>
      %c0_13 = arith.constant 0 : index
      %c0_14 = arith.constant 0 : index
      %26 = vector.load %arg9[%c0_13, %c0_14] : memref<8x128xf32, #tpu.memory_space<vmem>>, vector<8x128xf32>
      %27 = vector.shape_cast %26 : vector<8x128xf32> to vector<1x8x128xf32>
      %cst_15 = arith.constant dense<0.000000e+00> : vector<1xf32>
      %28 = vector.multi_reduction <add>, %27, %cst_15 [1, 2] : vector<1x8x128xf32> to vector<1xf32>
      %29 = vector.shape_cast %28 : vector<1xf32> to vector<1x1x1xf32>
      %30 = vector.extract %29[0, 0, 0] : f32 from vector<1x1x1xf32>
      %c0_16 = arith.constant 0 : index
      %c2 = arith.constant 2 : index
      %31 = memref.load %arg6[%c0_16, %c2] : memref<1x3xf32, #tpu.memory_space<smem>>
      memref.store %30, %arg6[%c0_16, %c2] : memref<1x3xf32, #tpu.memory_space<smem>>
    } else {
    }
    return
  }
  func.func @transform_0(%arg0: i32, %arg1: i32) -> (i32, i32) {
    %c2_i32 = arith.constant 2 : i32
    %0 = arith.muli %arg0, %c2_i32 : i32
    %1 = arith.addi %0, %arg1 : i32
    %c1_i32 = arith.constant 1 : i32
    %2 = arith.minsi %1, %c1_i32 : i32
    %c0_i32 = arith.constant 0 : i32
    %c0_i32_0 = arith.constant 0 : i32
    return %c0_i32, %2 : i32, i32
  }
  func.func @transform_1(%arg0: i32, %arg1: i32) -> (i32, i32) {
    %c2_i32 = arith.constant 2 : i32
    %0 = arith.muli %arg0, %c2_i32 : i32
    %1 = arith.addi %0, %arg1 : i32
    %c1_i32 = arith.constant 1 : i32
    %2 = arith.minsi %1, %c1_i32 : i32
    %c0_i32 = arith.constant 0 : i32
    %c0_i32_0 = arith.constant 0 : i32
    return %c0_i32, %2 : i32, i32
  }
  func.func @transform_2(%arg0: i32, %arg1: i32) -> (i32, i32, i32) {
    %c2_i32 = arith.constant 2 : i32
    %0 = arith.muli %arg0, %c2_i32 : i32
    %1 = arith.addi %0, %arg1 : i32
    %c1_i32 = arith.constant 1 : i32
    %2 = arith.minsi %1, %c1_i32 : i32
    %c0_i32 = arith.constant 0 : i32
    %c0_i32_0 = arith.constant 0 : i32
    %c0_i32_1 = arith.constant 0 : i32
    return %c0_i32, %c0_i32_0, %2 : i32, i32, i32
  }
  func.func @transform_3(%arg0: i32, %arg1: i32) -> (i32, i32) {
    %c0_i32 = arith.constant 0 : i32
    %c0_i32_0 = arith.constant 0 : i32
    %c0_i32_1 = arith.constant 0 : i32
    return %c0_i32, %c0_i32_0 : i32, i32
  }
  func.func @transform_4(%arg0: i32, %arg1: i32) -> (i32, i32) {
    %c0_i32 = arith.constant 0 : i32
    %c0_i32_0 = arith.constant 0 : i32
    return %arg0, %c0_i32 : i32, i32
  }
}

</mosaic_0001>

<llo_original>
// kernel: tpu_custom_call.1
$region0: #{tpu_custom_call.1}
  #allocation0 [shape = 'u32[]', space=smem, size = 0x4, offset = 0x4, fixed_abs, tag = 'smem constant byte address 0x4 - core index']
  #allocation1 [shape = 'u32[144,128]{1,0:T(1,128)}', space=vmem, size = 0x12000, scoped, tag = 'internal scratch']
  #allocation2 [shape = 'f32[8,128]{1,0:T(8,128)}', space=vmem, size = 0x1000, scoped, tag = 'scratch operand']
  #allocation3 [shape = 'f32[8,128]{1,0:T(8,128)}', space=vmem, size = 0x1000, scoped, tag = 'scratch operand']
  #allocation4 [shape = 'f32[8,128]{1,0:T(8,128)}', space=vmem, size = 0x1000, scoped, tag = 'scratch operand']
  %s0 = inlined_call_operand.hbm [shape: f32[8,192], index: 0, kind: input, shape index: {}]
  %s1 = inlined_call_operand.hbm [shape: f32[8,192], index: 1, kind: input, shape index: {}]
  %s2 = inlined_call_operand.hbm [shape: f32[2,8,192], index: 2, kind: input, shape index: {}]
  %s3 = inlined_call_operand.vmem [shape: f32[8,2], index: 3, kind: input, shape index: {}]
  %s4 = inlined_call_operand.hbm [shape: f32[1,3], index: 4, kind: output, shape index: {}]
  %s5 = sld [smem:[#allocation0]]
  $region77: #{tpu_custom_call.1} parent=0
    _
  %s7 = ssub.s32 1, %s5
  %s8 = scalar_select 0, %s7, %s5
  $region1: #{tpu_custom_call.1} parent=0
    #allocation5 [shape = 'u8[8192]{0}', space=vmem, size = 0x2000, scoped, tag = 'input window, operand 0']
    #allocation6 [shape = 's32[2]{0}', space=sflag, size = 0x8, scoped, tag = 'scoped memory for tpu_custom_call.1']
    #allocation7 [shape = 's32[2]{0}', space=sflag, size = 0x8, scoped, tag = 'scoped memory for tpu_custom_call.1']
    #allocation8 [shape = 'u8[8192]{0}', space=vmem, size = 0x2000, scoped, tag = 'input window, operand 1']
    #allocation9 [shape = 's32[2]{0}', space=sflag, size = 0x8, scoped, tag = 'scoped memory for tpu_custom_call.1']
    #allocation10 [shape = 'u8[16384]{0}', space=vmem, size = 0x4000, scoped, tag = 'input window, operand 2']
    #allocation11 [shape = 'u8[512]{0}', space=smem, size = 0x200, scoped, tag = 'output window, operand 0, single buffered']
    %9 = vsyncpa [#allocation6], 0
    %s10 = scalar_lea.sflag [#allocation6], 1
    %11 = vsyncpa %s10, 0
    %12 = vsyncpa [#allocation9], 0
    %s13 = scalar_lea.sflag [#allocation9], 1
    %14 = vsyncpa %s13, 0
    %15 = vsyncpa [#allocation7], 0
    loop: start=0, step=1, limit=4
    $region2: #{tpu_custom_call.1} parent=1 // loop_pre_header
      _
    $region3: #{tpu_custom_call.1} parent=1 // loop_header
      %s17 = sphi 0, %s21
      %p18 = scmp.ge.s32.totalorder %s17, 4
      %s24 = sphi 0, %s36
      %s25 = sphi 0, %s32
      %s26 = sphi 0, %s24
      %s27 = sphi 0, %s25
      %s28 = sphi 0, %s26
      %s29 = sphi 0, %s27
      %s47 = sphi 0, %s49
      %s50 = sphi 0, %s47
      %s51 = sphi 0, %s50
      %s67 = sphi 0, %s51
      %s81 = sphi 0, %s83
      %s84 = sphi 0, %s81
      %s85 = sphi 0, %s84
      %s101 = sphi 0, %s85
      %s115 = sphi 0, %s117
      %s118 = sphi 0, %s115
      %s119 = sphi 0, %s118
      %s135 = sphi 0, %s119
      %s139 = sphi 0, %s139
      %s141 = sphi 0, %s139
      %s142 = sphi 0, %s141
      %s156 = sphi 0, %s142
      %s162 = sphi 0, %s164
      %s165 = sphi 0, %s162
      %s166 = sphi 0, %s165
      %s182 = sphi 0, %s166
    $region4: #{tpu_custom_call.1} parent=1 // loop_header_branch
      %20 = sbr.rel (%p18) target = $region8
    $region5: #{tpu_custom_call.1} parent=1 // loop_body
      %s22 = ssub.s32 %s17, 1
      %s23 = ssub.s32 %s17, 2
      %s30 = sadd.s32 1, %s25
      %p31 = scmp.ge.s32.totalorder %s30, 2
      %s32 = scalar_select %p31, 0, %s30
      %s33 = sadd.s32 1, %s24
      %s34 = scalar_select %p31, %s33, %s24
      %p35 = scmp.ge.s32.totalorder %s34, 1
      %s36 = scalar_select %p35, 0, %s34
      %s37 = smul.u32 %s24, 2
      %s38 = sadd.s32 %s37, %s25
      %p39 = scmp.lt.s32.totalorder %s38, 1
      %s40 = scalar_select %p39, %s38, 1
      %s41 = smul.u32 %s36, 2
      %s42 = sadd.s32 %s41, %s32
      %p43 = scmp.lt.s32.totalorder %s42, 1
      %s44 = scalar_select %p43, %s42, 1
      %s45 = ssub.s32 %s40, %s44
      %p46 = scmp.eq.s32.totalorder %s45, 0
      %s48 = sadd.s32 %s47, 1
      %s49 = scalar_select %p46, %s47, %s48
      %p52 = pneg %p46
      %p53 = scmp.eq.s32.totalorder %s17, 1
      %p54 = por %p52, %p53
      %p55 = scmp.ne.s32.totalorder %s47, %s50
      %p56 = scmp.eq.s32.totalorder %s17, 0
      %p57 = por %p55, %p56
      %p58 = scmp.ne.s32.totalorder %s47, %s50
      %p59 = scmp.eq.s32.totalorder %s22, 1
      %p60 = por %p58, %p59
      %p61 = scmp.ne.s32.totalorder %s50, %s51
      %p62 = scmp.eq.s32.totalorder %s22, 0
      %p63 = por %p61, %p62
      %p64 = scmp.ne.s32.totalorder %s50, %s51
      %p65 = scmp.eq.s32.totalorder %s23, 1
      %p66 = por %p64, %p65
      %p68 = scmp.ne.s32.totalorder %s51, %s67
      %p69 = scmp.eq.s32.totalorder %s23, 0
      %p70 = por %p68, %p69
      %s71 = smul.u32 %s24, 2
      %s72 = sadd.s32 %s71, %s25
      %p73 = scmp.lt.s32.totalorder %s72, 1
      %s74 = scalar_select %p73, %s72, 1
      %s75 = smul.u32 %s36, 2
      %s76 = sadd.s32 %s75, %s32
      %p77 = scmp.lt.s32.totalorder %s76, 1
      %s78 = scalar_select %p77, %s76, 1
      %s79 = ssub.s32 %s74, %s78
      %p80 = scmp.eq.s32.totalorder %s79, 0
      %s82 = sadd.s32 %s81, 1
      %s83 = scalar_select %p80, %s81, %s82
      %p86 = pneg %p80
      %p87 = scmp.eq.s32.totalorder %s17, 1
      %p88 = por %p86, %p87
      %p89 = scmp.ne.s32.totalorder %s81, %s84
      %p90 = scmp.eq.s32.totalorder %s17, 0
      %p91 = por %p89, %p90
      %p92 = scmp.ne.s32.totalorder %s81, %s84
      %p93 = scmp.eq.s32.totalorder %s22, 1
      %p94 = por %p92, %p93
      %p95 = scmp.ne.s32.totalorder %s84, %s85
      %p96 = scmp.eq.s32.totalorder %s22, 0
      %p97 = por %p95, %p96
      %p98 = scmp.ne.s32.totalorder %s84, %s85
      %p99 = scmp.eq.s32.totalorder %s23, 1
      %p100 = por %p98, %p99
      %p102 = scmp.ne.s32.totalorder %s85, %s101
      %p103 = scmp.eq.s32.totalorder %s23, 0
      %p104 = por %p102, %p103
      %s105 = smul.u32 %s24, 2
      %s106 = sadd.s32 %s105, %s25
      %p107 = scmp.lt.s32.totalorder %s106, 1
      %s108 = scalar_select %p107, %s106, 1
      %s109 = smul.u32 %s36, 2
      %s110 = sadd.s32 %s109, %s32
      %p111 = scmp.lt.s32.totalorder %s110, 1
      %s112 = scalar_select %p111, %s110, 1
      %s113 = ssub.s32 %s108, %s112
      %p114 = scmp.eq.s32.totalorder %s113, 0
      %s116 = sadd.s32 %s115, 1
      %s117 = scalar_select %p114, %s115, %s116
      %p120 = pneg %p114
      %p121 = scmp.eq.s32.totalorder %s17, 1
      %p122 = por %p120, %p121
      %p123 = scmp.ne.s32.totalorder %s115, %s118
      %p124 = scmp.eq.s32.totalorder %s17, 0
      %p125 = por %p123, %p124
      %p126 = scmp.ne.s32.totalorder %s115, %s118
      %p127 = scmp.eq.s32.totalorder %s22, 1
      %p128 = por %p126, %p127
      %p129 = scmp.ne.s32.totalorder %s118, %s119
      %p130 = scmp.eq.s32.totalorder %s22, 0
      %p131 = por %p129, %p130
      %p132 = scmp.ne.s32.totalorder %s118, %s119
      %p133 = scmp.eq.s32.totalorder %s23, 1
      %p134 = por %p132, %p133
      %p136 = scmp.ne.s32.totalorder %s119, %s135
      %p137 = scmp.eq.s32.totalorder %s23, 0
      %p138 = por %p136, %p137
      %s140 = sadd.s32 %s139, 1
      %p143 = scmp.eq.s32.totalorder %s17, 1
      %p144 = scmp.ne.s32.totalorder %s139, %s141
      %p145 = scmp.eq.s32.totalorder %s17, 0
      %p146 = por %p144, %p145
      %p147 = scmp.ne.s32.totalorder %s139, %s141
      %p148 = scmp.eq.s32.totalorder %s22, 1
      %p149 = por %p147, %p148
      %p150 = scmp.ne.s32.totalorder %s141, %s142
      %p151 = scmp.eq.s32.totalorder %s22, 0
      %p152 = por %p150, %p151
      %p153 = scmp.ne.s32.totalorder %s141, %s142
      %p154 = scmp.eq.s32.totalorder %s23, 1
      %p155 = por %p153, %p154
      %p157 = scmp.ne.s32.totalorder %s142, %s156
      %p158 = scmp.eq.s32.totalorder %s23, 0
      %p159 = por %p157, %p158
      %s160 = ssub.s32 %s24, %s36
      %p161 = scmp.eq.s32.totalorder %s160, 0
      %s163 = sadd.s32 %s162, 1
      %s164 = scalar_select %p161, %s162, %s163
      %p167 = pneg %p161
      %p168 = scmp.eq.s32.totalorder %s17, 1
      %p169 = por %p167, %p168
      %p170 = scmp.ne.s32.totalorder %s162, %s165
      %p171 = scmp.eq.s32.totalorder %s17, 0
      %p172 = por %p170, %p171
      %p173 = scmp.ne.s32.totalorder %s162, %s165
      %p174 = scmp.eq.s32.totalorder %s22, 1
      %p175 = por %p173, %p174
      %p176 = scmp.ne.s32.totalorder %s165, %s166
      %p177 = scmp.eq.s32.totalorder %s22, 0
      %p178 = por %p176, %p177
      %p179 = scmp.ne.s32.totalorder %s165, %s166
      %p180 = scmp.eq.s32.totalorder %s23, 1
      %p181 = por %p179, %p180
      %p183 = scmp.ne.s32.totalorder %s166, %s182
      %p184 = scmp.eq.s32.totalorder %s23, 0
      %p185 = por %p183, %p184
      %p186 = scmp.le.s32.totalorder 1, %s17
      %p187 = scmp.lt.s32.totalorder %s17, 3
      %p188 = pnand %p186, %p187
      %p189 = pneg %p188
      // Predicated region
      $region9: #{tpu_custom_call.1} parent=5 // pred_check
        _
      $region10: #{tpu_custom_call.1} parent=5 // pred_check_branch
        %191 = sbr.rel (%p188) target = $region12
      $region11: #{tpu_custom_call.1} parent=5 // pred_region
        %s192 = ssub.s32 %s17, 1
        // Predicated region
        $region13: #{tpu_custom_call.1} parent=11 // pred_check
          %p193 = pneg %p152
        $region14: #{tpu_custom_call.1} parent=11 // pred_check_branch
          %195 = sbr.rel (%p193) target = $region16
        $region15: #{tpu_custom_call.1} parent=11 // pred_region
          _
        $region16: #{tpu_custom_call.1} parent=11 // pred_fallthru
          _
      $region12: #{tpu_custom_call.1} parent=5 // pred_fallthru
        _
      %p196 = scmp.lt.s32.totalorder %s17, 2
      // Predicated region
      $region17: #{tpu_custom_call.1} parent=5 // pred_check
        %p197 = pneg %p196
      $region18: #{tpu_custom_call.1} parent=5 // pred_check_branch
        %199 = sbr.rel (%p197) target = $region20
      $region19: #{tpu_custom_call.1} parent=5 // pred_region
        // Predicated region
        $region21: #{tpu_custom_call.1} parent=19 // pred_check
          %p200 = pneg %p57
        $region22: #{tpu_custom_call.1} parent=19 // pred_check_branch
          %202 = sbr.rel (%p200) target = $region24
        $region23: #{tpu_custom_call.1} parent=19 // pred_region
          %s203 = sand.u32 %s47, 1
          %s204 = scalar_lea.sflag [#allocation6], %s203
          %s205 = sand.u32 %s47, 1
          %s206 = smul.addr %s205, 8
          %s207 = scalar_lea.vmem [#allocation5], %s206
          %s208 = smul.u32 %s24, 2
          %s209 = sadd.s32 %s208, %s25
          %p210 = scmp.lt.s32.totalorder %s209, 1
          %s211 = scalar_select %p210, %s209, 1
          %s213 = ssub.s32 128, 128
          %214 = vsyncadd %s204, %s213
          %s215 = smul.addr %s211, 128
          %s216 = scalar_lea.hbm %s0, %s215
          %s218 = sshll.u32 %s207, 4
          %s219 = int_to_ptr.vmem [resolvable:$true] %s218
          %221 = dma.hbm_to_vmem [thread:$0]  %s216, 128, %s219, %s204
        $region24: #{tpu_custom_call.1} parent=19 // pred_fallthru
          _
        // Predicated region
        $region25: #{tpu_custom_call.1} parent=19 // pred_check
          %p222 = pneg %p91
        $region26: #{tpu_custom_call.1} parent=19 // pred_check_branch
          %224 = sbr.rel (%p222) target = $region28
        $region27: #{tpu_custom_call.1} parent=19 // pred_region
          %s225 = sand.u32 %s17, 1
          %s226 = scalar_lea.sflag [#allocation9], %s225
          %s227 = sand.u32 %s81, 1
          %s228 = smul.addr %s227, 8
          %s229 = scalar_lea.vmem [#allocation8], %s228
          %s230 = smul.u32 %s24, 2
          %s231 = sadd.s32 %s230, %s25
          %p232 = scmp.lt.s32.totalorder %s231, 1
          %s233 = scalar_select %p232, %s231, 1
          %s235 = ssub.s32 128, 128
          %236 = vsyncadd %s226, %s235
          %s237 = smul.addr %s233, 128
          %s238 = scalar_lea.hbm %s1, %s237
          %s240 = sshll.u32 %s229, 4
          %s241 = int_to_ptr.vmem [resolvable:$true] %s240
          %243 = dma.hbm_to_vmem [thread:$0]  %s238, 128, %s241, %s226
        $region28: #{tpu_custom_call.1} parent=19 // pred_fallthru
          _
        // Predicated region
        $region29: #{tpu_custom_call.1} parent=19 // pred_check
          %p244 = pneg %p125
        $region30: #{tpu_custom_call.1} parent=19 // pred_check_branch
          %246 = sbr.rel (%p244) target = $region32
        $region31: #{tpu_custom_call.1} parent=19 // pred_region
          %s247 = sand.u32 %s17, 1
          %s248 = scalar_lea.sflag [#allocation9], %s247
          %s249 = sand.u32 %s115, 1
          %s250 = smul.addr %s249, 16
          %s251 = scalar_lea.vmem [#allocation10], %s250
          %s252 = smul.u32 %s24, 2
          %s253 = sadd.s32 %s252, %s25
          %p254 = scmp.lt.s32.totalorder %s253, 1
          %s255 = scalar_select %p254, %s253, 1
          %s257 = ssub.s32 256, 256
          %258 = vsyncadd %s248, %s257
          %s259 = smul.addr %s255, 128
          %s260 = scalar_lea.hbm %s2, %s259
          %s261 = sshll.u32 %s251, 4
          %s262 = int_to_ptr.vmem [resolvable:$true] %s261
          %267 = dma.hbm_to_vmem [thread:$0]  %s260, 256, %s262, %s248, 256, 128, 8
        $region32: #{tpu_custom_call.1} parent=19 // pred_fallthru
          _
      $region20: #{tpu_custom_call.1} parent=5 // pred_fallthru
        _
      %p268 = scmp.le.s32.totalorder 1, %s17
      %p269 = scmp.lt.s32.totalorder %s17, 3
      %p270 = pnand %p268, %p269
      %p271 = pneg %p270
      // Predicated region
      $region33: #{tpu_custom_call.1} parent=5 // pred_check
        _
      $region34: #{tpu_custom_call.1} parent=5 // pred_check_branch
        %273 = sbr.rel (%p270) target = $region36
      $region35: #{tpu_custom_call.1} parent=5 // pred_region
        %s274 = ssub.s32 %s17, 1
        %s275 = sand.u32 %s50, 1
        %s276 = scalar_lea.sflag [#allocation6], %s275
        %s277 = sand.u32 %s50, 1
        %s278 = smul.addr %s277, 8
        %s279 = scalar_lea.vmem [#allocation5], %s278
        // Predicated region
        $region37: #{tpu_custom_call.1} parent=35 // pred_check
          %p280 = pneg %p63
        $region38: #{tpu_custom_call.1} parent=35 // pred_check_branch
          %282 = sbr.rel (%p280) target = $region40
        $region39: #{tpu_custom_call.1} parent=35 // pred_region
          %283 = dma.done %s276, 128
        $region40: #{tpu_custom_call.1} parent=35 // pred_fallthru
          _
        %s284 = sand.u32 %s22, 1
        %s285 = scalar_lea.sflag [#allocation9], %s284
        %s286 = sand.u32 %s84, 1
        %s287 = smul.addr %s286, 8
        %s288 = scalar_lea.vmem [#allocation8], %s287
        // Predicated region
        $region41: #{tpu_custom_call.1} parent=35 // pred_check
          %p289 = pneg %p97
        $region42: #{tpu_custom_call.1} parent=35 // pred_check_branch
          %291 = sbr.rel (%p289) target = $region44
        $region43: #{tpu_custom_call.1} parent=35 // pred_region
          %292 = dma.done %s285, 128
        $region44: #{tpu_custom_call.1} parent=35 // pred_fallthru
          _
        %s293 = sand.u32 %s22, 1
        %s294 = scalar_lea.sflag [#allocation9], %s293
        %s295 = sand.u32 %s118, 1
        %s296 = smul.addr %s295, 16
        %s297 = scalar_lea.vmem [#allocation10], %s296
        // Predicated region
        $region45: #{tpu_custom_call.1} parent=35 // pred_check
          %p298 = pneg %p131
        $region46: #{tpu_custom_call.1} parent=35 // pred_check_branch
          %300 = sbr.rel (%p298) target = $region48
        $region47: #{tpu_custom_call.1} parent=35 // pred_region
          %301 = dma.done %s294, 256
        $region48: #{tpu_custom_call.1} parent=35 // pred_fallthru
          _
        %s302 = sand.u32 %s50, 1
        %s303 = scalar_lea.sflag [#allocation6], %s302
        %s304 = sand.u32 %s50, 1
        %s305 = smul.addr %s304, 8
        %s306 = scalar_lea.vmem [#allocation5], %s305
        %p307 = pneg %p63
        %p308 = pneg %p60
        %s309 = sand.u32 %s22, 1
        %s310 = scalar_lea.sflag [#allocation9], %s309
        %s311 = sand.u32 %s84, 1
        %s312 = smul.addr %s311, 8
        %s313 = scalar_lea.vmem [#allocation8], %s312
        %p314 = pneg %p97
        %p315 = pneg %p94
        %s316 = sand.u32 %s22, 1
        %s317 = scalar_lea.sflag [#allocation9], %s316
        %s318 = sand.u32 %s118, 1
        %s319 = smul.addr %s318, 16
        %s320 = scalar_lea.vmem [#allocation10], %s319
        %p321 = pneg %p131
        %p322 = pneg %p128
        %p323 = pneg %p152
        %p324 = pneg %p149
        %p325 = pneg %p178
        %p326 = pneg %p175
        %s327 = smul.u32 %s26, 2
        %s328 = sadd.s32 %s327, %s27
        %p329 = scmp.lt.s32.totalorder %s328, 1
        %s330 = scalar_select %p329, %s328, 1
        %s331 = smul.u32 %s26, 2
        %s332 = sadd.s32 %s331, %s27
        %p333 = scmp.lt.s32.totalorder %s332, 1
        %s334 = scalar_select %p333, %s332, 1
        %s335 = smul.u32 %s26, 2
        %s336 = sadd.s32 %s335, %s27
        %p337 = scmp.lt.s32.totalorder %s336, 1
        %s338 = scalar_select %p337, %s336, 1
        %s339 = smul.u32 %s26, 2
        %s340 = sadd.s32 %s339, %s27
        %p341 = scmp.eq.s32.totalorder %s27, 0
        // Predicated region
        $region49: #{tpu_custom_call.1} parent=35 // pred_check
          %p342 = pneg %p341
        $region50: #{tpu_custom_call.1} parent=35 // pred_check_branch
          %344 = sbr.rel (%p342) target = $region52
        $region51: #{tpu_custom_call.1} parent=35 // pred_region
          %345 = vst [vmem:[#allocation2] sm:$0xff] 0.0
          %346 = vst [vmem:[#allocation3] sm:$0xff] 0.0
          %347 = vst [vmem:[#allocation4] sm:$0xff] 0.0
        $region52: #{tpu_custom_call.1} parent=35 // pred_fallthru
          _
        %p348 = scmp.lt.s32.totalorder %s340, 1
        // Predicated region
        $region53: #{tpu_custom_call.1} parent=35 // pred_check
          %p349 = pneg %p348
        $region54: #{tpu_custom_call.1} parent=35 // pred_check_branch
          %351 = sbr.rel (%p349) target = $region56
        $region55: #{tpu_custom_call.1} parent=35 // pred_region
          %v352 = vld [vmem:[%s279] sm:$0xff]
          %v353 = vld [vmem:[%s288] sm:$0xff]
          %v354 = vlog2.pop %v352
          %v355 = vmul.f32 %v354, 0.6931472
          %v356 = vmax.f32 %v355, -100.0
          %v357 = vsub.f32 1.0, %v352
          %v358 = vlog2.pop %v357
          %v359 = vmul.f32 %v358, 0.6931472
          %v360 = vmax.f32 %v359, -100.0
          %v361 = vsub.f32 %v356, %v360
          %v362 = vmul.f32 %v353, %v361
          %v363 = vadd.f32 %v362, %v360
          %v364 = vsub.f32 0.0, %v363
          %vm365 = vcmp.ge.f32.partialorder %v353, 0.5
          %v366 = vld [vmem:[%s297] sm:$0xff]
          %s367 = scalar_lea.vmem %s297, 8 [#allocation10]
          %v368 = vld [vmem:[%s367] sm:$0xff]
          %v369 = vld [vmem:[%s3] sm:$0xff]
          %371 = vset.pattern.permute.xlu0 0
          %372 = vperm.xlu0 %371, %v369
          %v373 = vpop.permute.xlu0 %372
          %v375 = vsub.f32 %v366, %v373
          %v376 = vand.u32 2147483647, %v375
          %vm377 = vcmp.lt.f32.partialorder %v376, 1.0
          %v378 = vmul.f32 %v375, 0.5
          %v379 = vmul.f32 %v378, %v375
          %v380 = vsub.f32 %v376, 0.5
          %v381 = vsel %vm377, %v379, %v380
          %382 = vset.pattern.permute.xlu0 1
          %383 = vperm.xlu0 %382, %v369
          %v384 = vpop.permute.xlu0 %383
          %v386 = vsub.f32 %v368, %v384
          %v387 = vand.u32 2147483647, %v386
          %vm388 = vcmp.lt.f32.partialorder %v387, 1.0
          %v389 = vmul.f32 %v386, 0.5
          %v390 = vmul.f32 %v389, %v386
          %v391 = vsub.f32 %v387, 0.5
          %v392 = vsel %vm388, %v390, %v391
          %v393 = vadd.f32 %v381, %v392
          %v394 = vld [vmem:[#allocation2] sm:$0xff]
          %v395 = vadd.f32 %v394, %v364
          %396 = vst [vmem:[#allocation2] sm:$0xff] %v395
          %v397 = vld [vmem:[#allocation3] sm:$0xff]
          %v398 = vsel %vm365, %v393, 0.0
          %v399 = vadd.f32 %v397, %v398
          %400 = vst [vmem:[#allocation3] sm:$0xff] %v399
          %v401 = vld [vmem:[#allocation4] sm:$0xff]
          %v402 = vsel %vm365, 1, 0
          %v403 = vcvt.s32.f32 %v402
          %v404 = vadd.f32 %v401, %v403
          %405 = vst [vmem:[#allocation4] sm:$0xff] %v404
        $region56: #{tpu_custom_call.1} parent=35 // pred_fallthru
          _
        %p406 = scmp.eq.s32.totalorder %s340, 1
        // Predicated region
        $region57: #{tpu_custom_call.1} parent=35 // pred_check
          %p407 = pneg %p406
        $region58: #{tpu_custom_call.1} parent=35 // pred_check_branch
          %409 = sbr.rel (%p407) target = $region60
        $region59: #{tpu_custom_call.1} parent=35 // pred_region
          %v410 = vlaneseq
          %v411 = vand.u32 %v410, 127
          %s412 = smul.u32 %s340, 128
          %v413 = vstv %s412
          %v414 = vadd.s32 %v413, %v411
          %vm415 = vcmp.lt.s32.totalorder %v414, 192
          %v416 = vld [vmem:[%s279] sm:$0xff]
          %v417 = vld [vmem:[%s288] sm:$0xff]
          %v418 = vlog2.pop %v416
          %v419 = vmul.f32 %v418, 0.6931472
          %v420 = vmax.f32 %v419, -100.0
          %v421 = vsub.f32 1.0, %v416
          %v422 = vlog2.pop %v421
          %v423 = vmul.f32 %v422, 0.6931472
          %v424 = vmax.f32 %v423, -100.0
          %v425 = vsub.f32 %v420, %v424
          %v426 = vmul.f32 %v417, %v425
          %v427 = vadd.f32 %v426, %v424
          %v428 = vsub.f32 0.0, %v427
          %vm429 = vcmp.ge.f32.partialorder %v417, 0.5
          %v430 = vld [vmem:[%s297] sm:$0xff]
          %s431 = scalar_lea.vmem %s297, 8 [#allocation10]
          %v432 = vld [vmem:[%s431] sm:$0xff]
          %v433 = vld [vmem:[%s3] sm:$0xff]
          %435 = vset.pattern.permute.xlu0 0
          %436 = vperm.xlu0 %435, %v433
          %v437 = vpop.permute.xlu0 %436
          %v439 = vsub.f32 %v430, %v437
          %v440 = vand.u32 2147483647, %v439
          %vm441 = vcmp.lt.f32.partialorder %v440, 1.0
          %v442 = vmul.f32 %v439, 0.5
          %v443 = vmul.f32 %v442, %v439
          %v444 = vsub.f32 %v440, 0.5
          %v445 = vsel %vm441, %v443, %v444
          %446 = vset.pattern.permute.xlu0 1
          %447 = vperm.xlu0 %446, %v433
          %v448 = vpop.permute.xlu0 %447
          %v450 = vsub.f32 %v432, %v448
          %v451 = vand.u32 2147483647, %v450
          %vm452 = vcmp.lt.f32.partialorder %v451, 1.0
          %v453 = vmul.f32 %v450, 0.5
          %v454 = vmul.f32 %v453, %v450
          %v455 = vsub.f32 %v451, 0.5
          %v456 = vsel %vm452, %v454, %v455
          %v457 = vadd.f32 %v445, %v456
          %vm458 = vmand %vm429, %vm415
          %v459 = vld [vmem:[#allocation2] sm:$0xff]
          %v460 = vsel %vm415, %v428, 0.0
          %v461 = vadd.f32 %v459, %v460
          %462 = vst [vmem:[#allocation2] sm:$0xff] %v461
          %v463 = vld [vmem:[#allocation3] sm:$0xff]
          %v464 = vsel %vm458, %v457, 0.0
          %v465 = vadd.f32 %v463, %v464
          %466 = vst [vmem:[#allocation3] sm:$0xff] %v465
          %v467 = vld [vmem:[#allocation4] sm:$0xff]
          %v468 = vsel %vm458, 1, 0
          %v469 = vcvt.s32.f32 %v468
          %v470 = vadd.f32 %v467, %v469
          %471 = vst [vmem:[#allocation4] sm:$0xff] %v470
        $region60: #{tpu_custom_call.1} parent=35 // pred_fallthru
          _
        %p472 = scmp.eq.s32.totalorder %s27, 1
        // Predicated region
        $region61: #{tpu_custom_call.1} parent=35 // pred_check
          %p473 = pneg %p472
        $region62: #{tpu_custom_call.1} parent=35 // pred_check_branch
          %475 = sbr.rel (%p473) target = $region64
        $region63: #{tpu_custom_call.1} parent=35 // pred_region
          %v476 = vld [vmem:[#allocation2] sm:$0xff]
          %477 = vadd.xlane.f32.xlu0 %v476
          %v478 = vpop.xlane.xlu0 %477
          %v479 = vrot.slane %v478, 4
          %v480 = vadd.f32 %v478, %v479
          %v481 = vrot.slane %v480, 2
          %v482 = vadd.f32 %v480, %v481
          %v483 = vrot.slane %v482, 1
          %v484 = vadd.f32 %v482, %v483
          %s485 = vtos %v484
          %s486 = scalar_lea.smem [#allocation11], 0
          %487 = sst [smem:[%s486]] %s485
          %v488 = vld [vmem:[#allocation3] sm:$0xff]
          %489 = vadd.xlane.f32.xlu0 %v488
          %v490 = vpop.xlane.xlu0 %489
          %v491 = vrot.slane %v490, 4
          %v492 = vadd.f32 %v490, %v491
          %v493 = vrot.slane %v492, 2
          %v494 = vadd.f32 %v492, %v493
          %v495 = vrot.slane %v494, 1
          %v496 = vadd.f32 %v494, %v495
          %s497 = vtos %v496
          %s498 = scalar_lea.smem [#allocation11], 1
          %499 = sst [smem:[%s498]] %s497
          %v500 = vld [vmem:[#allocation4] sm:$0xff]
          %501 = vadd.xlane.f32.xlu0 %v500
          %v502 = vpop.xlane.xlu0 %501
          %v503 = vrot.slane %v502, 4
          %v504 = vadd.f32 %v502, %v503
          %v505 = vrot.slane %v504, 2
          %v506 = vadd.f32 %v504, %v505
          %v507 = vrot.slane %v506, 1
          %v508 = vadd.f32 %v506, %v507
          %s509 = vtos %v508
          %s510 = scalar_lea.smem [#allocation11], 2
          %511 = sst [smem:[%s510]] %s509
        $region64: #{tpu_custom_call.1} parent=35 // pred_fallthru
          _
        // Predicated region
        $region65: #{tpu_custom_call.1} parent=35 // pred_check
          %p512 = pneg %p175
        $region66: #{tpu_custom_call.1} parent=35 // pred_check_branch
          %514 = sbr.rel (%p512) target = $region68
        $region67: #{tpu_custom_call.1} parent=35 // pred_region
          %s516 = ssub.s32 16, 16
          %517 = vsyncadd [#allocation7], %s516
          %s518 = smul.addr %s26, 16
          %s519 = scalar_lea.hbm %s4, %s518
          %522 = dma.smem_to_hbm [#allocation11], 16, %s519, [#allocation7]
        $region68: #{tpu_custom_call.1} parent=35 // pred_fallthru
          _
        // Predicated region
        $region69: #{tpu_custom_call.1} parent=35 // pred_check
          %p523 = pneg %p175
        $region70: #{tpu_custom_call.1} parent=35 // pred_check_branch
          %525 = sbr.rel (%p523) target = $region72
        $region71: #{tpu_custom_call.1} parent=35 // pred_region
          %526 = dma.done [#allocation7], 16
        $region72: #{tpu_custom_call.1} parent=35 // pred_fallthru
          _
        %527 = sfence
      $region36: #{tpu_custom_call.1} parent=5 // pred_fallthru
        _
      %p528 = scmp.le.s32.totalorder 2, %s17
      // Predicated region
      $region73: #{tpu_custom_call.1} parent=5 // pred_check
        %p529 = pneg %p528
      $region74: #{tpu_custom_call.1} parent=5 // pred_check_branch
        %531 = sbr.rel (%p529) target = $region76
      $region75: #{tpu_custom_call.1} parent=5 // pred_region
        %s532 = ssub.s32 %s17, 2
      $region76: #{tpu_custom_call.1} parent=5 // pred_fallthru
        _
    $region6: #{tpu_custom_call.1} parent=1 // loop_footer
      %s21 = sadd.s32 1, %s17
    $region7: #{tpu_custom_call.1} parent=1 // loop_footer_branch
      %16 = sbr.rel target = $region3
    $region8: #{tpu_custom_call.1} parent=1 // loop_exit
      _
    %533 = vsyncpa [#allocation6], 1
    %s534 = scalar_lea.sflag [#allocation6], 1
    %535 = vsyncpa %s534, 1
    %536 = vsyncpa [#allocation9], 1
    %s537 = scalar_lea.sflag [#allocation9], 1
    %538 = vsyncpa %s537, 1
    %539 = vsyncpa [#allocation7], 1
    %s540 = scalar_lea.sflag [#allocation7], 1
    %541 = vsyncpa %s540, 1

</llo_original>
